<compile_context>
chip_gen: v6e
topology: v6e:2x2x1
jax: 0.10.0
libtpu: 0.0.40
codegen_flags: <defaults>
</compile_context>

<pallas_src>
import functools

import jax
import jax.numpy as jnp
from jax.experimental import pallas as pl
from jax.experimental.pallas import tpu as pltpu

ALPHA = 0.25
GAMMA = 2.0            # epilogue uses jnp.square (gamma == 2); avoids pow NaN at pt == 1
IGNORE_INDEX = 255.0   # 255 is exactly representable in bf16/f32; ints cast exactly to f32

LANES = 128
MAX_TILE_ROWS = 2048        # (2048, 128) f32 = 1 MiB per input block; 4 MiB double-buffered
VMEM_LIMIT_BYTES = 32 * 1024 * 1024


def _cdiv(a, b):
    return (a + b - 1) // b


def _round_up(a, b):
    return _cdiv(a, b) * b


def _sublane_multiple(dtype):
    # (8,128) block constraint for 32-bit, (16,128) for 16-bit, (32,128) for 8-bit.
    return max(8, 32 // jnp.dtype(dtype).itemsize)


def _detect_num_shards():
    # One shard per TensorCore: 2 on v7x, 1 on v5e/v6e (single TC -> extra shards
    # are pure serial overhead).
    try:
        kind = jax.devices()[0].device_kind.lower()
    except Exception:
        return 1
    return 2 if ("v7" in kind or "7x" in kind) else 1


_NUM_SHARDS = _detect_num_shards()


def _bce_with_logits(x, y):
    # Numerically-stable BCE-with-logits (matches torch.nn.BCEWithLogitsLoss):
    #   max(x, 0) - x*y + log(1 + exp(-|x|))
    return jnp.maximum(x, 0.0) - x * y + jnp.log1p(jnp.exp(-jnp.abs(x)))


def _partial_sums_kernel(p_ref, l_ref, acc_ref, *,
                         rows, tile_rows, tiles_per_shard, total_tiles):
    s = pl.program_id(0)   # parallel shard axis (one per TensorCore)
    t = pl.program_id(1)   # arbitrary (reduction) axis within the shard

    @pl.when(t == 0)
    def _init():
        acc_ref[...] = jnp.zeros_like(acc_ref)

    global_tile = s * tiles_per_shard + t
    n_sub = tile_rows // 8

    def _accumulate(bce, validf):
        # (tile_rows, 128) -> (tile_rows//8, 8, 128) is a layout-trivial split of
        # the sublane axis (f32 operands only); summing over the leading axis is
        # plain vreg adds — no per-step cross-lane XLU reduce, no scalar RMW chain.
        acc_ref[0] += jnp.sum(bce.reshape(n_sub, 8, LANES), axis=0)
        acc_ref[1] += jnp.sum(validf.reshape(n_sub, 8, LANES), axis=0)

    # Fast path: tile is entirely within the real rows -> only the ignore-index
    # test is needed (no iota range mask, no zero-before-arithmetic selects).
    is_full = (global_tile + 1) * tile_rows <= rows

    @pl.when(is_full)
    def _fast():
        x = p_ref[...].astype(jnp.float32)          # upcast in-register, native HBM read
        y = l_ref[...].astype(jnp.float32)
        valid = y != IGNORE_INDEX
        bce = jnp.where(valid, _bce_with_logits(x, y), 0.0)   # select, no NaN leak
        _accumulate(bce, valid.astype(jnp.float32))

    # Slow path: partial last tile of the slab and/or phantom tiles from the
    # ceil-divided shard axis. Zero masked lanes BEFORE arithmetic so stale /
    # garbage block padding can never produce NaN/Inf.
    @pl.when(jnp.logical_not(is_full))
    def _slow():
        x = p_ref[...].astype(jnp.float32)
        y = l_ref[...].astype(jnp.float32)
        fetch_tile = jnp.minimum(global_tile, total_tiles - 1)   # what index_map fetched
        row0 = fetch_tile * tile_rows
        sub = jax.lax.broadcasted_iota(jnp.int32, (tile_rows, LANES), 0)
        in_range = ((row0 + sub) < rows) & (global_tile < total_tiles)
        valid = in_range & (y != IGNORE_INDEX)
        xs = jnp.where(valid, x, 0.0)
        ys = jnp.where(valid, y, 0.0)
        bce = jnp.where(valid, _bce_with_logits(xs, ys), 0.0)
        _accumulate(bce, valid.astype(jnp.float32))


@jax.jit
def focal_loss(preds, labels):
    """preds, labels: arrays of identical shape (e.g. NCHW), any dtype. Returns scalar f32."""
    p = preds.reshape(-1)      # free reshape, NO dtype cast (cast happens in-kernel)
    l = labels.reshape(-1)
    n = p.shape[0]

    rows = n // LANES
    rem = n - rows * LANES

    total_sum = jnp.float32(0.0)
    total_cnt = jnp.float32(0.0)

    if rows > 0:
        if rem:
            # Rare path (n not a multiple of 128): a single prefix-slice pre-pass
            # per input (no dtype-cast pass on top of it).
            p_main = jax.lax.slice(p, (0,), (rows * LANES,))
            l_main = jax.lax.slice(l, (0,), (rows * LANES,))
        else:
            p_main, l_main = p, l          # no pad, no copy
        p2 = p_main.reshape(rows, LANES)
        l2 = l_main.reshape(rows, LANES)

        # Respect the per-dtype sublane tiling constraint for the block shape.
        sub_mult = max(_sublane_multiple(p2.dtype), _sublane_multiple(l2.dtype))
        tile_rows = min(MAX_TILE_ROWS, _round_up(rows, sub_mult))
        total_tiles = _cdiv(rows, tile_rows)
        n_shards = min(_NUM_SHARDS, total_tiles)
        tiles_per_shard = _cdiv(total_tiles, n_shards)

        def in_map(s, t):
            # Clamp so phantom tiles re-fetch the last real block (masked in-kernel).
            return (jnp.minimum(s * tiles_per_shard + t, total_tiles - 1), 0)

        kernel = functools.partial(
            _partial_sums_kernel,
            rows=rows, tile_rows=tile_rows,
            tiles_per_shard=tiles_per_shard, total_tiles=total_tiles)

        acc = pl.pallas_call(
            kernel,
            out_shape=jax.ShapeDtypeStruct((n_shards, 2, 8, LANES), jnp.float32),
            grid_spec=pltpu.PrefetchScalarGridSpec(
                num_scalar_prefetch=0,
                grid=(n_shards, tiles_per_shard),
                in_specs=[
                    pl.BlockSpec((tile_rows, LANES), in_map),
                    pl.BlockSpec((tile_rows, LANES), in_map),
                ],
                # Fused sum/count accumulator: one resident (2, 8, 128) block per shard.
                out_specs=pl.BlockSpec((None, 2, 8, LANES), lambda s, t: (s, 0, 0, 0)),
            ),
            compiler_params=pltpu.CompilerParams(
                dimension_semantics=("parallel", "arbitrary"),
                vmem_limit_bytes=VMEM_LIMIT_BYTES,
            ),
        )(p2, l2)

        total_sum = total_sum + jnp.sum(acc[:, 0])
        total_cnt = total_cnt + jnp.sum(acc[:, 1])

    if rem:
        # <128 leftover elements: negligible, reduce in plain JAX.
        p_t = jax.lax.slice(p, (rows * LANES,), (n,)).astype(jnp.float32)
        l_t = jax.lax.slice(l, (rows * LANES,), (n,)).astype(jnp.float32)
        v = l_t != IGNORE_INDEX
        bt = _bce_with_logits(jnp.where(v, p_t, 0.0), jnp.where(v, l_t, 0.0))
        total_sum = total_sum + jnp.sum(jnp.where(v, bt, 0.0))
        total_cnt = total_cnt + jnp.sum(v.astype(jnp.float32))

    # Scalar focal epilogue (negligible work -> plain JAX).
    # NOTE: if every element is ignored (total_cnt == 0) this is NaN, matching
    # the PyTorch reference behaviour.
    bce_mean = total_sum / total_cnt
    logpt = -bce_mean
    pt = jnp.exp(logpt)
    # gamma == 2: jnp.square avoids the float-pow NaN path at pt == 1.
    return -jnp.square(1.0 - pt) * ALPHA * logpt


def _reference(preds, labels):
    p = preds.reshape(-1).astype(jnp.float32)
    l = labels.reshape(-1).astype(jnp.float32)
    valid = l != IGNORE_INDEX
    bce = _bce_with_logits(p, l)
    bce_mean = jnp.sum(jnp.where(valid, bce, 0.0)) / jnp.sum(valid)
    logpt = -bce_mean
    pt = jnp.exp(logpt)
    return -jnp.square(1.0 - pt) * ALPHA * logpt


if __name__ == "__main__":
    key = jax.random.PRNGKey(0)
    k1, k2, k3 = jax.random.split(key, 3)

    B, C, H, W = 2, 4, 16, 16

    # Check 1: f32 preds / f32 labels (matches the PyTorch module's typical use).
    preds = jax.random.normal(k1, (B, C, H, W), dtype=jnp.float32)
    labels = jax.random.bernoulli(k2, 0.5, (B, C, H, W)).astype(jnp.float32)
    ignore_mask = jax.random.bernoulli(k3, 0.1, (B, C, H, W))
    labels = jnp.where(ignore_mask, jnp.float32(IGNORE_INDEX), labels)

    loss = focal_loss(preds, labels)
    jax.block_until_ready(loss)
    ref = _reference(preds, labels)
    assert jnp.allclose(loss, ref, rtol=1e-5, atol=1e-6), (loss, ref)

    # Check 2: native low-precision inputs (bf16 preds, int32 labels) streamed
    # directly into the kernel with no wrapper-side cast.
    preds_bf16 = preds.astype(jnp.bfloat16)
    labels_int = jnp.where(ignore_mask, 255,
                           jax.random.bernoulli(k2, 0.5, (B, C, H, W)).astype(jnp.int32)
                           ).astype(jnp.int32)
    loss2 = focal_loss(preds_bf16, labels_int)
    jax.block_until_ready(loss2)
    ref2 = _reference(preds_bf16.astype(jnp.float32), labels_int.astype(jnp.float32))
    assert jnp.allclose(loss2, ref2, rtol=1e-5, atol=1e-6), (loss2, ref2)

    print("KERNEL_OK")
</pallas_src>

<mosaic_0001>
module attributes {stable_mosaic.version = 11 : i64} {
  func.func @_partial_sums_kernel(%arg0: i32, %arg1: i32, %arg2: memref<16x128xf32, #tpu.memory_space<vmem>>, %arg3: memref<16x128xf32, #tpu.memory_space<vmem>>, %arg4: memref<1x2x8x128xf32, #tpu.memory_space<vmem>>) attributes {dimension_semantics = [#tpu.dimension_semantics<parallel>, #tpu.dimension_semantics<arbitrary>], iteration_bounds = array<i64: 1, 1>, scalar_prefetch = 0 : i64, scratch_operands = 0 : i64, tpu.core_type = #tpu.core_type<tc>, window_params = [{transform_indices = @transform_0, window_bounds = array<i64: 16, 128>}, {transform_indices = @transform_1, window_bounds = array<i64: 16, 128>}, {transform_indices = @transform_2, window_bounds = array<i64: 1, 2, 8, 128>}]} {
    %c0_i32 = arith.constant 0 : i32
    %0 = arith.cmpi eq, %arg1, %c0_i32 : i32
    %1 = arith.extui %0 : i1 to i32
    %c0_i32_0 = arith.constant 0 : i32
    %2 = arith.cmpi ne, %1, %c0_i32_0 : i32
    scf.if %2 {
      %cst = arith.constant 0.000000e+00 : f32
      %13 = vector.broadcast %cst : f32 to vector<2x8x128xf32>
      %c0 = arith.constant 0 : index
      %c0_5 = arith.constant 0 : index
      %c0_6 = arith.constant 0 : index
      %c0_7 = arith.constant 0 : index
      %14 = vector.load %arg4[%c0, %c0_5, %c0_6, %c0_7] : memref<1x2x8x128xf32, #tpu.memory_space<vmem>>, vector<1x2x8x128xf32>
      %15 = vector.shape_cast %14 : vector<1x2x8x128xf32> to vector<2x8x128xf32>
      %16 = vector.shape_cast %13 : vector<2x8x128xf32> to vector<1x2x8x128xf32>
      tpu.vector_store %arg4[%c0, %c0_5, %c0_6, %c0_7], %16 {strides = array<i32>} : memref<1x2x8x128xf32, #tpu.memory_space<vmem>>, vector<1x2x8x128xf32>,
    } else {
    }
    %c1_i32 = arith.constant 1 : i32
    %3 = arith.muli %arg0, %c1_i32 : i32
    %4 = arith.addi %3, %arg1 : i32
    %c1_i32_1 = arith.constant 1 : i32
    %5 = arith.addi %4, %c1_i32_1 : i32
    %c16_i32 = arith.constant 16 : i32
    %6 = arith.muli %5, %c16_i32 : i32
    %c16_i32_2 = arith.constant 16 : i32
    %7 = arith.cmpi sle, %6, %c16_i32_2 : i32
    %8 = arith.extui %7 : i1 to i32
    %c0_i32_3 = arith.constant 0 : i32
    %9 = arith.cmpi ne, %8, %c0_i32_3 : i32
    scf.if %9 {
      %c0 = arith.constant 0 : index
      %c0_5 = arith.constant 0 : index
      %13 = vector.load %arg2[%c0, %c0_5] : memref<16x128xf32, #tpu.memory_space<vmem>>, vector<16x128xf32>
      %c0_6 = arith.constant 0 : index
      %c0_7 = arith.constant 0 : index
      %14 = vector.load %arg3[%c0_6, %c0_7] : memref<16x128xf32, #tpu.memory_space<vmem>>, vector<16x128xf32>
      %cst = arith.constant 2.550000e+02 : f32
      %15 = vector.broadcast %cst : f32 to vector<16x128xf32>
      %16 = arith.cmpf one, %14, %15 : vector<16x128xf32>
      %cst_8 = arith.constant 0.000000e+00 : f32
      %17 = vector.broadcast %cst_8 : f32 to vector<16x128xf32>
      %18 = arith.maximumf %13, %17 : vector<16x128xf32>
      %19 = arith.mulf %13, %14 : vector<16x128xf32>
      %20 = arith.subf %18, %19 : vector<16x128xf32>
      %21 = math.absf %13 : vector<16x128xf32>
      %cst_9 = arith.constant 0.000000e+00 : f32
      %22 = vector.broadcast %cst_9 : f32 to vector<16x128xf32>
      %23 = arith.subf %22, %21 : vector<16x128xf32>
      %24 = math.exp %23 : vector<16x128xf32>
      %25 = math.log1p %24 : vector<16x128xf32>
      %26 = arith.addf %20, %25 : vector<16x128xf32>
      %cst_10 = arith.constant 0.000000e+00 : f32
      %27 = vector.broadcast %cst_10 : f32 to vector<16x128xf32>
      %28 = arith.select %16, %26, %27 : vector<16x128xi1>, vector<16x128xf32>
      %29 = arith.extui %16 : vector<16x128xi1> to vector<16x128xi32>
      %30 = arith.sitofp %29 : vector<16x128xi32> to vector<16x128xf32>
      %c0_11 = arith.constant 0 : index
      %c0_12 = arith.constant 0 : index
      %c0_13 = arith.constant 0 : index
      %c0_14 = arith.constant 0 : index
      %31 = vector.load %arg4[%c0_11, %c0_12, %c0_13, %c0_14] : memref<1x2x8x128xf32, #tpu.memory_space<vmem>>, vector<1x1x8x128xf32>
      %32 = vector.shape_cast %31 : vector<1x1x8x128xf32> to vector<8x128xf32>
      %33 = vector.shape_cast %28 : vector<16x128xf32> to vector<2x8x128xf32>
      %cst_15 = arith.constant dense<0.000000e+00> : vector<8x128xf32>
      %34 = vector.multi_reduction <add>, %33, %cst_15 [0] : vector<2x8x128xf32> to vector<8x128xf32>
      %35 = arith.addf %32, %34 : vector<8x128xf32>
      %c0_16 = arith.constant 0 : index
      %c0_17 = arith.constant 0 : index
      %c0_18 = arith.constant 0 : index
      %c0_19 = arith.constant 0 : index
      %36 = vector.load %arg4[%c0_16, %c0_17, %c0_18, %c0_19] : memref<1x2x8x128xf32, #tpu.memory_space<vmem>>, vector<1x1x8x128xf32>
      %37 = vector.shape_cast %36 : vector<1x1x8x128xf32> to vector<8x128xf32>
      %38 = vector.shape_cast %35 : vector<8x128xf32> to vector<1x1x8x128xf32>
      tpu.vector_store %arg4[%c0_16, %c0_17, %c0_18, %c0_19], %38 {strides = array<i32>} : memref<1x2x8x128xf32, #tpu.memory_space<vmem>>, vector<1x1x8x128xf32>,
      %c0_20 = arith.constant 0 : index
      %c1 = arith.constant 1 : index
      %c0_21 = arith.constant 0 : index
      %c0_22 = arith.constant 0 : index
      %39 = vector.load %arg4[%c0_20, %c1, %c0_21, %c0_22] : memref<1x2x8x128xf32, #tpu.memory_space<vmem>>, vector<1x1x8x128xf32>
      %40 = vector.shape_cast %39 : vector<1x1x8x128xf32> to vector<8x128xf32>
      %41 = vector.shape_cast %30 : vector<16x128xf32> to vector<2x8x128xf32>
      %cst_23 = arith.constant dense<0.000000e+00> : vector<8x128xf32>
      %42 = vector.multi_reduction <add>, %41, %cst_23 [0] : vector<2x8x128xf32> to vector<8x128xf32>
      %43 = arith.addf %40, %42 : vector<8x128xf32>
      %c0_24 = arith.constant 0 : index
      %c1_25 = arith.constant 1 : index
      %c0_26 = arith.constant 0 : index
      %c0_27 = arith.constant 0 : index
      %44 = vector.load %arg4[%c0_24, %c1_25, %c0_26, %c0_27] : memref<1x2x8x128xf32, #tpu.memory_space<vmem>>, vector<1x1x8x128xf32>
      %45 = vector.shape_cast %44 : vector<1x1x8x128xf32> to vector<8x128xf32>
      %46 = vector.shape_cast %43 : vector<8x128xf32> to vector<1x1x8x128xf32>
      tpu.vector_store %arg4[%c0_24, %c1_25, %c0_26, %c0_27], %46 {strides = array<i32>} : memref<1x2x8x128xf32, #tpu.memory_space<vmem>>, vector<1x1x8x128xf32>,
    } else {
    }
    %true = arith.constant true
    %10 = arith.xori %7, %true : i1
    %11 = arith.extui %10 : i1 to i32
    %c0_i32_4 = arith.constant 0 : i32
    %12 = arith.cmpi ne, %11, %c0_i32_4 : i32
    scf.if %12 {
      %c0 = arith.constant 0 : index
      %c0_5 = arith.constant 0 : index
      %13 = vector.load %arg2[%c0, %c0_5] : memref<16x128xf32, #tpu.memory_space<vmem>>, vector<16x128xf32>
      %c0_6 = arith.constant 0 : index
      %c0_7 = arith.constant 0 : index
      %14 = vector.load %arg3[%c0_6, %c0_7] : memref<16x128xf32, #tpu.memory_space<vmem>>, vector<16x128xf32>
      %c0_i32_8 = arith.constant 0 : i32
      %15 = arith.minsi %4, %c0_i32_8 : i32
      %c16_i32_9 = arith.constant 16 : i32
      %16 = arith.muli %15, %c16_i32_9 : i32
      %17 = tpu.iota {dimensions = array<i32: 0>} : vector<16x128xi32>
      %18 = vector.broadcast %16 : i32 to vector<16x128xi32>
      %19 = arith.addi %18, %17 : vector<16x128xi32>
      %c16_i32_10 = arith.constant 16 : i32
      %20 = vector.broadcast %c16_i32_10 : i32 to vector<16x128xi32>
      %21 = arith.cmpi slt, %19, %20 : vector<16x128xi32>
      %c1_i32_11 = arith.constant 1 : i32
      %22 = arith.cmpi slt, %4, %c1_i32_11 : i32
      %23 = vector.broadcast %22 : i1 to vector<16x128xi1>
      %24 = arith.andi %21, %23 : vector<16x128xi1>
      %cst = arith.constant 2.550000e+02 : f32
      %25 = vector.broadcast %cst : f32 to vector<16x128xf32>
      %26 = arith.cmpf one, %14, %25 : vector<16x128xf32>
      %27 = arith.andi %24, %26 : vector<16x128xi1>
      %cst_12 = arith.constant 0.000000e+00 : f32
      %28 = vector.broadcast %cst_12 : f32 to vector<16x128xf32>
      %29 = arith.select %27, %13, %28 : vector<16x128xi1>, vector<16x128xf32>
      %cst_13 = arith.constant 0.000000e+00 : f32
      %30 = vector.broadcast %cst_13 : f32 to vector<16x128xf32>
      %31 = arith.select %27, %14, %30 : vector<16x128xi1>, vector<16x128xf32>
      %cst_14 = arith.constant 0.000000e+00 : f32
      %32 = vector.broadcast %cst_14 : f32 to vector<16x128xf32>
      %33 = arith.maximumf %29, %32 : vector<16x128xf32>
      %34 = arith.mulf %29, %31 : vector<16x128xf32>
      %35 = arith.subf %33, %34 : vector<16x128xf32>
      %36 = math.absf %29 : vector<16x128xf32>
      %cst_15 = arith.constant 0.000000e+00 : f32
      %37 = vector.broadcast %cst_15 : f32 to vector<16x128xf32>
      %38 = arith.subf %37, %36 : vector<16x128xf32>
      %39 = math.exp %38 : vector<16x128xf32>
      %40 = math.log1p %39 : vector<16x128xf32>
      %41 = arith.addf %35, %40 : vector<16x128xf32>
      %cst_16 = arith.constant 0.000000e+00 : f32
      %42 = vector.broadcast %cst_16 : f32 to vector<16x128xf32>
      %43 = arith.select %27, %41, %42 : vector<16x128xi1>, vector<16x128xf32>
      %44 = arith.extui %27 : vector<16x128xi1> to vector<16x128xi32>
      %45 = arith.sitofp %44 : vector<16x128xi32> to vector<16x128xf32>
      %c0_17 = arith.constant 0 : index
      %c0_18 = arith.constant 0 : index
      %c0_19 = arith.constant 0 : index
      %c0_20 = arith.constant 0 : index
      %46 = vector.load %arg4[%c0_17, %c0_18, %c0_19, %c0_20] : memref<1x2x8x128xf32, #tpu.memory_space<vmem>>, vector<1x1x8x128xf32>
      %47 = vector.shape_cast %46 : vector<1x1x8x128xf32> to vector<8x128xf32>
      %48 = vector.shape_cast %43 : vector<16x128xf32> to vector<2x8x128xf32>
      %cst_21 = arith.constant dense<0.000000e+00> : vector<8x128xf32>
      %49 = vector.multi_reduction <add>, %48, %cst_21 [0] : vector<2x8x128xf32> to vector<8x128xf32>
      %50 = arith.addf %47, %49 : vector<8x128xf32>
      %c0_22 = arith.constant 0 : index
      %c0_23 = arith.constant 0 : index
      %c0_24 = arith.constant 0 : index
      %c0_25 = arith.constant 0 : index
      %51 = vector.load %arg4[%c0_22, %c0_23, %c0_24, %c0_25] : memref<1x2x8x128xf32, #tpu.memory_space<vmem>>, vector<1x1x8x128xf32>
      %52 = vector.shape_cast %51 : vector<1x1x8x128xf32> to vector<8x128xf32>
      %53 = vector.shape_cast %50 : vector<8x128xf32> to vector<1x1x8x128xf32>
      tpu.vector_store %arg4[%c0_22, %c0_23, %c0_24, %c0_25], %53 {strides = array<i32>} : memref<1x2x8x128xf32, #tpu.memory_space<vmem>>, vector<1x1x8x128xf32>,
      %c0_26 = arith.constant 0 : index
      %c1 = arith.constant 1 : index
      %c0_27 = arith.constant 0 : index
      %c0_28 = arith.constant 0 : index
      %54 = vector.load %arg4[%c0_26, %c1, %c0_27, %c0_28] : memref<1x2x8x128xf32, #tpu.memory_space<vmem>>, vector<1x1x8x128xf32>
      %55 = vector.shape_cast %54 : vector<1x1x8x128xf32> to vector<8x128xf32>
      %56 = vector.shape_cast %45 : vector<16x128xf32> to vector<2x8x128xf32>
      %cst_29 = arith.constant dense<0.000000e+00> : vector<8x128xf32>
      %57 = vector.multi_reduction <add>, %56, %cst_29 [0] : vector<2x8x128xf32> to vector<8x128xf32>
      %58 = arith.addf %55, %57 : vector<8x128xf32>
      %c0_30 = arith.constant 0 : index
      %c1_31 = arith.constant 1 : index
      %c0_32 = arith.constant 0 : index
      %c0_33 = arith.constant 0 : index
      %59 = vector.load %arg4[%c0_30, %c1_31, %c0_32, %c0_33] : memref<1x2x8x128xf32, #tpu.memory_space<vmem>>, vector<1x1x8x128xf32>
      %60 = vector.shape_cast %59 : vector<1x1x8x128xf32> to vector<8x128xf32>
      %61 = vector.shape_cast %58 : vector<8x128xf32> to vector<1x1x8x128xf32>
      tpu.vector_store %arg4[%c0_30, %c1_31, %c0_32, %c0_33], %61 {strides = array<i32>} : memref<1x2x8x128xf32, #tpu.memory_space<vmem>>, vector<1x1x8x128xf32>,
    } else {
    }
    return
  }
  func.func @transform_0(%arg0: i32, %arg1: i32) -> (i32, i32) {
    %c1_i32 = arith.constant 1 : i32
    %0 = arith.muli %arg0, %c1_i32 : i32
    %1 = arith.addi %0, %arg1 : i32
    %c0_i32 = arith.constant 0 : i32
    %2 = arith.minsi %1, %c0_i32 : i32
    %c0_i32_0 = arith.constant 0 : i32
    %c0_i32_1 = arith.constant 0 : i32
    return %2, %c0_i32_0 : i32, i32
  }
  func.func @transform_1(%arg0: i32, %arg1: i32) -> (i32, i32) {
    %c1_i32 = arith.constant 1 : i32
    %0 = arith.muli %arg0, %c1_i32 : i32
    %1 = arith.addi %0, %arg1 : i32
    %c0_i32 = arith.constant 0 : i32
    %2 = arith.minsi %1, %c0_i32 : i32
    %c0_i32_0 = arith.constant 0 : i32
    %c0_i32_1 = arith.constant 0 : i32
    return %2, %c0_i32_0 : i32, i32
  }
  func.func @transform_2(%arg0: i32, %arg1: i32) -> (i32, i32, i32, i32) {
    %c0_i32 = arith.constant 0 : i32
    %c0_i32_0 = arith.constant 0 : i32
    %c0_i32_1 = arith.constant 0 : i32
    %c0_i32_2 = arith.constant 0 : i32
    return %arg0, %c0_i32, %c0_i32_0, %c0_i32_1 : i32, i32, i32, i32
  }
}

</mosaic_0001>

<llo_original>
// kernel: focal_loss.1
$region0: #{focal_loss.1}
  #allocation0 [shape = 'u32[]', space=smem, size = 0x4, offset = 0x4, fixed_abs, tag = 'smem constant byte address 0x4 - core index']
  #allocation1 [shape = 'u32[144,128]{1,0:T(1,128)}', space=vmem, size = 0x12000, scoped, tag = 'internal scratch']
  %s0 = inlined_call_operand.vmem [shape: f32[16,128], index: 0, kind: input, shape index: {}]
  %s1 = inlined_call_operand.vmem [shape: f32[16,128], index: 1, kind: input, shape index: {}]
  %s2 = inlined_call_operand.vmem [shape: f32[1,2,8,128], index: 2, kind: output, shape index: {}]
  %s3 = sld [smem:[#allocation0]]
  $region30: #{focal_loss.1} parent=0
    _
  %s5 = ssub.s32 1, %s3
  %s6 = scalar_select 0, %s5, %s3
  // Predicated region
  $region2: #{focal_loss.1} parent=0 // pred_check
    _
  $region3: #{focal_loss.1} parent=0 // pred_check_branch
    %8 = sbr.rel (0) target = $region5
  $region4: #{focal_loss.1} parent=0 // pred_region
    %s9 = sadd.s32 0, 0
    %p10 = scmp.lt.s32.totalorder %s9, 0
    %s11 = scalar_select %p10, %s9, 0
    %s12 = smul.u32 2, %s11
    %p13 = scmp.lt.s32.totalorder %s12, 1
    %s14 = scalar_select %p13, %s12, 1
    %s15 = smul.addr %s14, 8
    %s16 = scalar_lea.vmem %s0, %s15
    %s17 = sadd.s32 0, 0
    %p18 = scmp.lt.s32.totalorder %s17, 0
    %s19 = scalar_select %p18, %s17, 0
    %s20 = smul.u32 2, %s19
  $region5: #{focal_loss.1} parent=0 // pred_fallthru
    _
  // Predicated region
  $region6: #{focal_loss.1} parent=0 // pred_check
    _
  $region7: #{focal_loss.1} parent=0 // pred_check_branch
    %22 = sbr.rel (0) target = $region9
  $region8: #{focal_loss.1} parent=0 // pred_region
    %s23 = sadd.s32 0, 0
    %p24 = scmp.lt.s32.totalorder %s23, 0
    %s25 = scalar_select %p24, %s23, 0
    %s26 = smul.u32 2, %s25
    %p27 = scmp.lt.s32.totalorder %s26, 1
    %s28 = scalar_select %p27, %s26, 1
    %s29 = smul.addr %s28, 8
    %s30 = scalar_lea.vmem %s1, %s29
    %s31 = sadd.s32 0, 0
    %p32 = scmp.lt.s32.totalorder %s31, 0
    %s33 = scalar_select %p32, %s31, 0
    %s34 = smul.u32 2, %s33
  $region9: #{focal_loss.1} parent=0 // pred_fallthru
    _
  %s35 = sadd.s32 0, 0
  %p36 = scmp.lt.s32.totalorder %s35, 0
  %s37 = scalar_select %p36, %s35, 0
  %s38 = smul.u32 2, %s37
  %p39 = scmp.lt.s32.totalorder %s38, 1
  %s40 = scalar_select %p39, %s38, 1
  %s41 = smul.addr %s40, 8
  %s42 = scalar_lea.vmem %s0, %s41
  %s43 = sadd.s32 0, 0
  %p44 = scmp.lt.s32.totalorder %s43, 0
  %s45 = scalar_select %p44, %s43, 0
  %s46 = smul.u32 2, %s45
  %p47 = scmp.lt.s32.totalorder %s46, 1
  %s48 = scalar_select %p47, %s46, 1
  %s49 = smul.addr %s48, 8
  %s50 = scalar_lea.vmem %s1, %s49
  %s51 = sadd.s32 0, 0
  %p52 = scmp.lt.s32.totalorder %s51, 0
  %s53 = scalar_select %p52, %s51, 0
  %s54 = smul.u32 2, %s53
  %p55 = scmp.lt.s32.totalorder %s54, 1
  %s56 = scalar_select %p55, %s54, 1
  %s57 = smul.addr %s56, 8
  %s58 = scalar_lea.vmem %s0, %s57
  %s59 = sadd.s32 0, 0
  %p60 = scmp.lt.s32.totalorder %s59, 0
  %s61 = scalar_select %p60, %s59, 0
  %s62 = smul.u32 2, %s61
  %s63 = sadd.s32 0, 0
  %p64 = scmp.lt.s32.totalorder %s63, 0
  %s65 = scalar_select %p64, %s63, 0
  %s66 = smul.u32 2, %s65
  %p67 = scmp.lt.s32.totalorder %s66, 1
  %s68 = scalar_select %p67, %s66, 1
  %s69 = smul.addr %s68, 8
  %s70 = scalar_lea.vmem %s1, %s69
  %s71 = sadd.s32 0, 0
  %p72 = scmp.lt.s32.totalorder %s71, 0
  %s73 = scalar_select %p72, %s71, 0
  %s74 = smul.u32 2, %s73
  %p75 = scmp.eq.s32.totalorder 0, 0
  // Predicated region
  $region10: #{focal_loss.1} parent=0 // pred_check
    %p76 = pneg %p75
  $region11: #{focal_loss.1} parent=0 // pred_check_branch
    %78 = sbr.rel (%p76) target = $region13
  $region12: #{focal_loss.1} parent=0 // pred_region
    %79 = vst [vmem:[%s2] sm:$0xff] 0.0
    %80 = vst [vmem:[%s2 + $0x8] sm:$0xff] 0.0
  $region13: #{focal_loss.1} parent=0 // pred_fallthru
    _
  %s81 = sadd.s32 0, 0
  %s82 = sadd.s32 %s81, 1
  %s83 = smul.u32 %s82, 16
  %p84 = scmp.le.s32.totalorder %s83, 16
  // Predicated region
  $region14: #{focal_loss.1} parent=0 // pred_check
    %p85 = pneg %p84
  $region15: #{focal_loss.1} parent=0 // pred_check_branch
    %87 = sbr.rel (%p85) target = $region17
  $region16: #{focal_loss.1} parent=0 // pred_region
    %v88 = vld [vmem:[%s58] sm:$0xff]
    %v89 = vld [vmem:[%s58 + $0x8] sm:$0xff]
    %v90 = vld [vmem:[%s70] sm:$0xff]
    %v91 = vld [vmem:[%s70 + $0x8] sm:$0xff]
    %vm92 = vcmp.ne.f32.partialorder %v90, 255.0
    %vm93 = vcmp.ne.f32.partialorder %v91, 255.0
    %v94 = vmax.f32 %v88, 0.0
    %v95 = vmax.f32 %v89, 0.0
    %v96 = vmul.f32 %v88, %v90
    %v97 = vmul.f32 %v89, %v91
    %v98 = vsub.f32 %v94, %v96
    %v99 = vsub.f32 %v95, %v97
    %v100 = vand.u32 2147483647, %v88
    %v101 = vand.u32 2147483647, %v89
    %v102 = vsub.f32 0.0, %v100
    %v103 = vsub.f32 0.0, %v101
    %v104 = vmul.f32 %v102, 1.442695
    %v105 = vpow.pop %v104
    %v106 = vmul.f32 %v103, 1.442695
    %v107 = vpow.pop %v106
    %v108 = vadd.f32 %v105, 1.0
    %v109 = vlog2.pop %v108
    %v110 = vmul.f32 %v109, 0.6931472
    %v111 = vmul.f32 -0.5, %v105
    %v112 = vadd.f32 %v111, 1.0
    %v113 = vmul.f32 %v112, %v105
    %v114 = vand.u32 2147483647, %v105
    %vm115 = vcmp.lt.f32.partialorder %v114, 0.0004427343
    %v116 = vsel %vm115, %v113, %v110
    %v117 = vadd.f32 %v107, 1.0
    %v118 = vlog2.pop %v117
    %v119 = vmul.f32 %v118, 0.6931472
    %v120 = vmul.f32 -0.5, %v107
    %v121 = vadd.f32 %v120, 1.0
    %v122 = vmul.f32 %v121, %v107
    %v123 = vand.u32 2147483647, %v107
    %vm124 = vcmp.lt.f32.partialorder %v123, 0.0004427343
    %v125 = vsel %vm124, %v122, %v119
    %v126 = vadd.f32 %v98, %v116
    %v127 = vadd.f32 %v99, %v125
    %v128 = vsel %vm92, %v126, 0.0
    %v129 = vsel %vm93, %v127, 0.0
    %v130 = vsel %vm92, 1, 0
    %v131 = vsel %vm93, 1, 0
    %v132 = vcvt.s32.f32 %v130
    %v133 = vcvt.s32.f32 %v131
    %v134 = vld [vmem:[%s2] sm:$0xff]
    %v135 = vadd.f32 %v128, %v129
    %v136 = vadd.f32 %v134, %v135
    %137 = vst [vmem:[%s2] sm:$0xff] %v136
    %s138 = scalar_lea.vmem %s2, 8
    %v139 = vld [vmem:[%s138] sm:$0xff]
    %v140 = vadd.f32 %v132, %v133
    %v141 = vadd.f32 %v139, %v140
    %142 = vst [vmem:[%s138] sm:$0xff] %v141
  $region17: #{focal_loss.1} parent=0 // pred_fallthru
    _
  %p143 = scmp.gt.s32.totalorder %s83, 16
  // Predicated region
  $region18: #{focal_loss.1} parent=0 // pred_check
    %p144 = pneg %p143
  $region19: #{focal_loss.1} parent=0 // pred_check_branch
    %146 = sbr.rel (%p144) target = $region21
  $region20: #{focal_loss.1} parent=0 // pred_region
    %v147 = vld [vmem:[%s58] sm:$0xff]
    %v148 = vld [vmem:[%s58 + $0x8] sm:$0xff]
    %v149 = vld [vmem:[%s70] sm:$0xff]
    %v150 = vld [vmem:[%s70 + $0x8] sm:$0xff]
    %p151 = scmp.lt.s32.totalorder %s81, 0
    %s152 = scalar_select %p151, %s81, 0
    %s153 = smul.u32 %s152, 16
    %v154 = vlaneseq
    %v155 = vshrl.u32 %v154, 7
    %v156 = vadd.s32 %v155, 8
    %v157 = vstv %s153
    %v158 = vadd.s32 %v157, %v155
    %v159 = vadd.s32 %v157, %v156
    %vm160 = vcmp.lt.s32.totalorder %v158, 16
    %vm161 = vcmp.lt.s32.totalorder %v159, 16
    %p162 = scmp.lt.s32.totalorder %s81, 1
    %s163 = scalar_select %p162, 1, 0
    %v164 = vstv %s163
    %vm165 = vcmp.eq.s32.totalorder %v164, 1
    %vm166 = vmand %vm160, %vm165
    %vm167 = vmand %vm161, %vm165
    %vm168 = vcmp.ne.f32.partialorder %v149, 255.0
    %vm169 = vcmp.ne.f32.partialorder %v150, 255.0
    %vm170 = vmand %vm166, %vm168
    %vm171 = vmand %vm167, %vm169
    %v172 = vsel %vm170, %v147, 0.0
    %v173 = vsel %vm171, %v148, 0.0
    %v174 = vsel %vm170, %v149, 0.0
    %v175 = vsel %vm171, %v150, 0.0
    %v176 = vmax.f32 %v172, 0.0
    %v177 = vmax.f32 %v173, 0.0
    %v178 = vmul.f32 %v172, %v174
    %v179 = vmul.f32 %v173, %v175
    %v180 = vsub.f32 %v176, %v178
    %v181 = vsub.f32 %v177, %v179
    %v182 = vand.u32 2147483647, %v172
    %v183 = vand.u32 2147483647, %v173
    %v184 = vsub.f32 0.0, %v182
    %v185 = vsub.f32 0.0, %v183
    %v186 = vmul.f32 %v184, 1.442695
    %v187 = vpow.pop %v186
    %v188 = vmul.f32 %v185, 1.442695
    %v189 = vpow.pop %v188
    %v190 = vadd.f32 %v187, 1.0
    %v191 = vlog2.pop %v190
    %v192 = vmul.f32 %v191, 0.6931472
    %v193 = vmul.f32 -0.5, %v187
    %v194 = vadd.f32 %v193, 1.0
    %v195 = vmul.f32 %v194, %v187
    %v196 = vand.u32 2147483647, %v187
    %vm197 = vcmp.lt.f32.partialorder %v196, 0.0004427343
    %v198 = vsel %vm197, %v195, %v192
    %v199 = vadd.f32 %v189, 1.0
    %v200 = vlog2.pop %v199
    %v201 = vmul.f32 %v200, 0.6931472
    %v202 = vmul.f32 -0.5, %v189
    %v203 = vadd.f32 %v202, 1.0
    %v204 = vmul.f32 %v203, %v189
    %v205 = vand.u32 2147483647, %v189
    %vm206 = vcmp.lt.f32.partialorder %v205, 0.0004427343
    %v207 = vsel %vm206, %v204, %v201
    %v208 = vadd.f32 %v180, %v198
    %v209 = vadd.f32 %v181, %v207
    %v210 = vsel %vm170, %v208, 0.0
    %v211 = vsel %vm171, %v209, 0.0
    %v212 = vsel %vm170, 1, 0
    %v213 = vsel %vm171, 1, 0
    %v214 = vcvt.s32.f32 %v212
    %v215 = vcvt.s32.f32 %v213
    %v216 = vld [vmem:[%s2] sm:$0xff]
    %v217 = vadd.f32 %v210, %v211
    %v218 = vadd.f32 %v216, %v217
    %219 = vst [vmem:[%s2] sm:$0xff] %v218
    %s220 = scalar_lea.vmem %s2, 8
    %v221 = vld [vmem:[%s220] sm:$0xff]
    %v222 = vadd.f32 %v214, %v215
    %v223 = vadd.f32 %v221, %v222
    %224 = vst [vmem:[%s220] sm:$0xff] %v223
  $region21: #{focal_loss.1} parent=0 // pred_fallthru
    _
  // Predicated region
  $region22: #{focal_loss.1} parent=0 // pred_check
    _
  $region23: #{focal_loss.1} parent=0 // pred_check_branch
    %226 = sbr.rel (0) target = $region25
  $region24: #{focal_loss.1} parent=0 // pred_region
    _
  $region25: #{focal_loss.1} parent=0 // pred_fallthru
    _
  // Predicated region
  $region26: #{focal_loss.1} parent=0 // pred_check
    _
  $region27: #{focal_loss.1} parent=0 // pred_check_branch
    %228 = sbr.rel (0) target = $region29
  $region28: #{focal_loss.1} parent=0 // pred_region
    _
  $region29: #{focal_loss.1} parent=0 // pred_fallthru
    _

</llo_original>
